<compile_context>
chip_gen: v7x
topology: tpu7x:2x2x1
jax: 0.10.0
libtpu: 0.0.40
codegen_flags: <defaults>
</compile_context>

<pallas_src>
import functools
import math

import jax
import jax.numpy as jnp
from jax import lax
from jax.experimental import pallas as pl
from jax.experimental.pallas import tpu as pltpu

# Trace-time backend switch: hardware PRNG on TPU, portable counter-hash elsewhere.
_USE_HW_PRNG = jax.default_backend() == "tpu"

_LANE = 128
_TARGET_BLOCK_BYTES = 4 << 20  # ~4 MiB blocks: near HBM roofline, and with double
                               # buffering + scratch stays far below the 32 MiB
                               # scoped-VMEM default (and v7x's 64 MiB physical).
_MAX_ROW_TILE = 2048


def _round_up(x, m):
    return ((x + m - 1) // m) * m


def _pick_row_tile(n_rows, bytes_per_row):
    """Largest row tile (multiple of 8, <= _MAX_ROW_TILE) giving ~4 MiB blocks."""
    tile = _TARGET_BLOCK_BYTES // max(int(bytes_per_row), 1)
    tile = min(tile, _MAX_ROW_TILE)
    if tile >= n_rows:
        return n_rows                      # single full block (always a legal shape)
    return max(8, (tile // 8) * 8)         # multiple of 8 satisfies sublane tiling


# ---------------------------------------------------------------------------
# Kernel 1: count occurrences of sep_token_id (2-core split, VMEM accumulator)
# ---------------------------------------------------------------------------
def _count_sep_kernel(ids_ref, out_ref, acc_ref, *, sep_token_id, n_rows, row_tile, n_inner):
    c = pl.program_id(0)   # core-split axis ("parallel": v7x megacore, serial on v5e/v6e)
    t = pl.program_id(1)   # row-tile axis ("arbitrary": running reduction)

    @pl.when(t == 0)
    def _init():
        acc_ref[...] = jnp.zeros_like(acc_ref)

    # Unclamped global tile index; rows past n_rows (including the duplicated
    # clamped block of an idle core) are masked out by the global row index,
    # so per-step work is a compare + select + VPU add (no XLU, no scalar RMW).
    g = c * n_inner + t
    rows = lax.broadcasted_iota(jnp.int32, ids_ref.shape, 0) + g * row_tile
    hit = jnp.logical_and(rows < n_rows, ids_ref[...] == sep_token_id)
    acc_ref[...] += hit.astype(jnp.int32)

    @pl.when(t == n_inner - 1)
    def _finalize():  # one cross-lane reduction per core, written lane-dense
        out_ref[...] = jnp.zeros(out_ref.shape, jnp.int32) + jnp.sum(acc_ref[...])


def count_sep_tokens(input_ids, sep_token_id):
    """Per-core partial SEP counts, shape (2, 8, 128) int32; total = partials[:,0,0].sum()."""
    if input_ids.dtype != jnp.int32:
        input_ids = input_ids.astype(jnp.int32)
    n_rows, seq_len = input_ids.shape
    row_tile = _pick_row_tile(n_rows, seq_len * 4)
    n_tiles = pl.cdiv(n_rows, row_tile)
    n_cores = 2                                   # v7x has 2 TCs; harmless serial split elsewhere
    n_inner = pl.cdiv(n_tiles, n_cores)

    def ids_map(c, t):
        # Clamp so an idle core's extra step still addresses a valid block; the
        # kernel's global row mask zeroes its contribution.
        return (jnp.minimum(c * n_inner + t, n_tiles - 1), 0)

    kernel = functools.partial(
        _count_sep_kernel, sep_token_id=int(sep_token_id),
        n_rows=n_rows, row_tile=row_tile, n_inner=n_inner)

    return pl.pallas_call(
        kernel,
        out_shape=jax.ShapeDtypeStruct((n_cores, 8, _LANE), jnp.int32),
        grid=(n_cores, n_inner),
        in_specs=[pl.BlockSpec((row_tile, seq_len), ids_map)],
        out_specs=pl.BlockSpec((1, 8, _LANE), lambda c, t: (c, 0, 0)),
        scratch_shapes=[pltpu.VMEM((row_tile, seq_len), jnp.int32)],
        compiler_params=pltpu.CompilerParams(
            dimension_semantics=("parallel", "arbitrary")),
    )(input_ids)


# ---------------------------------------------------------------------------
# Uniform [0, 1) block generator shared by kernels 2 and 2+3(fused)
# ---------------------------------------------------------------------------
def _uniform_block(seed_scalar, tile_idx, shape, n_cols, row_offset):
    """Uniform [0,1) f32 block: TPU hardware PRNG (VALU-free) or counter hash fallback."""
    if _USE_HW_PRNG:
        pltpu.prng_seed(seed_scalar + tile_idx)          # distinct stream per row tile
        bits = pltpu.prng_random_bits(shape)
        if bits.dtype != jnp.uint32:
            bits = pltpu.bitcast(bits, jnp.uint32)
    else:
        # Tiling-invariant lowbias32-style hash keyed on the global element index.
        rows = lax.broadcasted_iota(jnp.int32, shape, 0) + row_offset
        cols = lax.broadcasted_iota(jnp.int32, shape, 1)
        idx = (rows * n_cols + cols).astype(jnp.uint32)
        x = idx + seed_scalar.astype(jnp.uint32) * jnp.uint32(0x9E3779B9) + jnp.uint32(0x7F4A7C15)
        x = x ^ (x >> 16)
        x = x * jnp.uint32(0x7FEB352D)
        x = x ^ (x >> 15)
        x = x * jnp.uint32(0x846CA68B)
        bits = x ^ (x >> 16)
    u24 = (bits >> 8).astype(jnp.int32)                  # top 24 bits: exact in f32
    return u24.astype(jnp.float32) * jnp.float32(1.0 / (1 << 24))


# ---------------------------------------------------------------------------
# Kernel 2: standalone mock core-[SEP] embeddings (encoder-only path)
# ---------------------------------------------------------------------------
def _mock_embeddings_kernel(seed_ref, out_ref, *, row_tile, n_cols):
    i = pl.program_id(0)
    out_ref[...] = _uniform_block(seed_ref[0], i, out_ref.shape, n_cols, i * row_tile)


def mock_core_embeddings(seed_arr, n_targets, embedding_dim):
    # Real encoder dims (768/1024) make this store lane-dense; for tiny demo D the
    # classifier uses the fused kernel below, so this path stays simple and exact-shaped.
    row_tile = _pick_row_tile(n_targets, embedding_dim * 4)
    grid = (pl.cdiv(n_targets, row_tile),)
    kernel = functools.partial(_mock_embeddings_kernel, row_tile=row_tile, n_cols=embedding_dim)
    return pl.pallas_call(
        kernel,
        out_shape=jax.ShapeDtypeStruct((n_targets, embedding_dim), jnp.float32),
        grid=grid,
        in_specs=[pl.BlockSpec(memory_space=pltpu.MemorySpace.SMEM)],
        out_specs=pl.BlockSpec((row_tile, embedding_dim), lambda i: (i, 0)),
        compiler_params=pltpu.CompilerParams(dimension_semantics=("parallel",)),
    )(seed_arr)


# ---------------------------------------------------------------------------
# Kernel 2+3 fused: generate embeddings in VMEM and apply the linear head
# ---------------------------------------------------------------------------
def _fused_mock_head_kernel(seed_ref, w_ref, b_ref, o_ref, *, emb_dim, row_tile):
    i = pl.program_id(0)
    emb = _uniform_block(seed_ref[0], i, (o_ref.shape[0], emb_dim), emb_dim, i * row_tile)
    o_ref[...] = (jnp.dot(emb, w_ref[...], preferred_element_type=jnp.float32)
                  + b_ref[...]).astype(o_ref.dtype)


def fused_mock_classifier(seed_arr, n_targets, embedding_dim, weight_padded, bias_padded, n_classes):
    c_pad = weight_padded.shape[1]
    row_tile = _pick_row_tile(n_targets, embedding_dim * 4)
    grid = (pl.cdiv(n_targets, row_tile),)
    kernel = functools.partial(_fused_mock_head_kernel, emb_dim=embedding_dim, row_tile=row_tile)
    logits = pl.pallas_call(
        kernel,
        out_shape=jax.ShapeDtypeStruct((n_targets, c_pad), jnp.float32),
        grid=grid,
        in_specs=[
            pl.BlockSpec(memory_space=pltpu.MemorySpace.SMEM),       # seed scalar
            pl.BlockSpec((embedding_dim, c_pad), lambda i: (0, 0)),  # weight, VMEM-resident
            pl.BlockSpec((1, c_pad), lambda i: (0, 0)),              # bias, VMEM-resident
        ],
        out_specs=pl.BlockSpec((row_tile, c_pad), lambda i: (i, 0)),  # lane-dense logits
        compiler_params=pltpu.CompilerParams(dimension_semantics=("parallel",)),
    )(seed_arr, weight_padded, bias_padded)
    return logits[:, :n_classes]


# ---------------------------------------------------------------------------
# Kernel 3: standalone linear head (generic-encoder path; dropout == identity)
# ---------------------------------------------------------------------------
def _linear_head_kernel(x_ref, w_ref, b_ref, o_ref):
    o_ref[...] = (jnp.dot(x_ref[...], w_ref[...], preferred_element_type=jnp.float32)
                  + b_ref[...]).astype(o_ref.dtype)


def linear_classifier(x, weight_padded, bias_padded, n_classes):
    if x.dtype != jnp.float32:
        x = x.astype(jnp.float32)
    n, d = x.shape
    c_pad = weight_padded.shape[1]
    row_tile = _pick_row_tile(n, (d + c_pad) * 4)
    grid = (pl.cdiv(n, row_tile),)
    logits = pl.pallas_call(
        _linear_head_kernel,
        out_shape=jax.ShapeDtypeStruct((n, c_pad), jnp.float32),
        grid=grid,
        in_specs=[
            pl.BlockSpec((row_tile, d), lambda i: (i, 0)),
            pl.BlockSpec((d, c_pad), lambda i: (0, 0)),
            pl.BlockSpec((1, c_pad), lambda i: (0, 0)),
        ],
        out_specs=pl.BlockSpec((row_tile, c_pad), lambda i: (i, 0)),
        compiler_params=pltpu.CompilerParams(dimension_semantics=("parallel",)),
    )(x, weight_padded, bias_padded)
    return logits[:, :n_classes]


# ---------------------------------------------------------------------------
# Module wrappers (mirror the PyTorch nn.Modules)
# ---------------------------------------------------------------------------
class MockDFCSC_SEP_Encoder:
    """Stand-in DFCSC sentence encoder: one uniform [0,1) embedding per core
    sentence, where n_core = n_sep_tokens - 2 * n_chunks."""

    def __init__(self, sep_token_id, embedding_dim, seed=0):
        self.sep_token_id = sep_token_id
        self.embedding_dim = embedding_dim
        self.seed = seed
        self._seed_arr = jnp.asarray([seed], dtype=jnp.int32)   # hoisted once

    def count_core_sentences(self, input_ids):
        n_chunks = input_ids.shape[0]
        partials = jax.device_get(count_sep_tokens(input_ids, self.sep_token_id))
        n_sep = int(partials[:, 0, 0].sum())     # host sync == torch .item()
        return n_sep - 2 * n_chunks

    def __call__(self, input_ids, attention_mask):
        del attention_mask  # accepted but unused, as in the reference mock
        n_targets = self.count_core_sentences(input_ids)
        if n_targets <= 0:
            return jnp.zeros((max(n_targets, 0), self.embedding_dim), jnp.float32)
        return mock_core_embeddings(self._seed_arr, n_targets, self.embedding_dim)


class DFCSC_SEP_Classifier:
    """Sentence classifier: encoder -> (Dropout, Linear(embedding_dim, n_classes))."""

    def __init__(self, encoder, n_classes, dropout_rate, embedding_dim, key):
        self.encoder = encoder
        self.n_classes = n_classes
        # TODO(synk): training-mode dropout (Bernoulli mask) not implemented; eval-mode
        # dropout is the identity, matching model.eval() semantics.
        self.dropout_rate = dropout_rate
        self.embedding_dim = embedding_dim
        k_w, k_b = jax.random.split(key)
        limit = math.sqrt(6.0 / (embedding_dim + n_classes))     # xavier_uniform_
        # Stored as (embedding_dim, n_classes) == torch Linear weight transposed.
        self.weight = jax.random.uniform(
            k_w, (embedding_dim, n_classes), jnp.float32, -limit, limit)
        b_lim = 1.0 / math.sqrt(embedding_dim)                   # torch Linear default bias init
        self.bias = jax.random.uniform(k_b, (n_classes,), jnp.float32, -b_lim, b_lim)
        # Hoisted once (not per forward): f32 head params zero-padded to a multiple
        # of 128 output columns so the head kernels store full-width vregs.
        c_pad = _round_up(max(n_classes, 1), _LANE)
        self.weight_padded = (jnp.zeros((embedding_dim, c_pad), jnp.float32)
                              .at[:, :n_classes].set(self.weight))
        self.bias_padded = (jnp.zeros((1, c_pad), jnp.float32)
                            .at[0, :n_classes].set(self.bias))

    def __call__(self, input_ids, attention_mask):
        if isinstance(self.encoder, MockDFCSC_SEP_Encoder):
            # Fused path: SEP-count kernel + ONE host sync for the data-dependent
            # shape, then a single kernel that generates the mock embeddings in
            # VMEM and applies the head (no (n, D) HBM round trip).
            n_targets = self.encoder.count_core_sentences(input_ids)
            if n_targets <= 0:
                return jnp.zeros((0, self.n_classes), jnp.float32)
            return fused_mock_classifier(
                self.encoder._seed_arr, n_targets, self.embedding_dim,
                self.weight_padded, self.bias_padded, self.n_classes)
        # Generic path (real encoder): embeddings -> linear head kernel.
        core_embeddings = self.encoder(input_ids, attention_mask)
        if core_embeddings.shape[0] == 0:
            return jnp.zeros((0, self.n_classes), jnp.float32)
        return linear_classifier(core_embeddings, self.weight_padded,
                                 self.bias_padded, self.n_classes)


# ---------------------------------------------------------------------------
if __name__ == "__main__":
    SEP_TOKEN_ID = 102
    EMBEDDING_DIM = 32
    N_CLASSES = 4
    n_chunks, seq_len = 2, 16

    key = jax.random.PRNGKey(0)
    k_ids, k_cls = jax.random.split(key)

    # Random token ids well away from the SEP id, plus 7 deterministic SEPs:
    #   chunk 0 -> 4 SEPs, chunk 1 -> 3 SEPs  => n_core_sentences = 7 - 2*2 = 3
    input_ids = jax.random.randint(k_ids, (n_chunks, seq_len), 1000, 2000, dtype=jnp.int32)
    for r, c in [(0, 0), (0, 3), (0, 7), (0, 15), (1, 0), (1, 5), (1, 15)]:
        input_ids = input_ids.at[r, c].set(SEP_TOKEN_ID)
    attention_mask = jnp.ones_like(input_ids)
    expected_targets = 7 - 2 * n_chunks  # 3

    encoder = MockDFCSC_SEP_Encoder(SEP_TOKEN_ID, EMBEDDING_DIM, seed=0)

    # Kernel 1: data-dependent core-sentence count.
    assert encoder.count_core_sentences(input_ids) == expected_targets

    # Kernels 1 + 2: standalone encoder path (uniform [0,1) core embeddings).
    emb = jax.block_until_ready(encoder(input_ids, attention_mask))
    assert emb.shape == (expected_targets, EMBEDDING_DIM) and emb.dtype == jnp.float32
    assert bool(jnp.all(emb >= 0.0)) and bool(jnp.all(emb < 1.0))

    model = DFCSC_SEP_Classifier(encoder, n_classes=N_CLASSES, dropout_rate=0.1,
                                 embedding_dim=EMBEDDING_DIM, key=k_cls)

    # Unfused head kernel checked against an XLA reference on the same embeddings.
    head = jax.block_until_ready(
        linear_classifier(emb, model.weight_padded, model.bias_padded, N_CLASSES))
    ref = jnp.dot(emb, model.weight, precision=jax.lax.Precision.HIGHEST) + model.bias[None, :]
    assert head.shape == (expected_targets, N_CLASSES)
    assert bool(jnp.allclose(head, ref, atol=5e-2, rtol=5e-2))

    # Full fused forward: count kernel + one host sync + fused generate+head kernel.
    logits = jax.block_until_ready(model(input_ids, attention_mask))
    assert logits.shape == (expected_targets, N_CLASSES) and logits.dtype == jnp.float32
    assert bool(jnp.all(jnp.isfinite(logits)))
    # With embeddings in [0,1), every logit must lie inside the achievable range —
    # verifies the fused kernel applied the correct (padded) weights and bias.
    hi = jnp.maximum(model.weight, 0.0).sum(axis=0) + model.bias + 1e-3
    lo = jnp.minimum(model.weight, 0.0).sum(axis=0) + model.bias - 1e-3
    assert bool(jnp.all(logits <= hi[None, :])) and bool(jnp.all(logits >= lo[None, :]))

    print("KERNEL_OK")
</pallas_src>

<mosaic_0001>
module attributes {stable_mosaic.version = 11 : i64} {
  func.func @_count_sep_kernel(%arg0: i32, %arg1: i32, %arg2: memref<2x16xi32, #tpu.memory_space<vmem>>, %arg3: memref<1x8x128xi32, #tpu.memory_space<vmem>>, %arg4: memref<2x16xi32, #tpu.memory_space<vmem>>) attributes {dimension_semantics = [#tpu.dimension_semantics<parallel>, #tpu.dimension_semantics<arbitrary>], iteration_bounds = array<i64: 2, 1>, scalar_prefetch = 0 : i64, scratch_operands = 1 : i64, tpu.core_type = #tpu.core_type<tc>, window_params = [{transform_indices = @transform_0, window_bounds = array<i64: 2, 16>}, {transform_indices = @transform_1, window_bounds = array<i64: 1, 8, 128>}]} {
    %c0_i32 = arith.constant 0 : i32
    %0 = arith.cmpi eq, %arg1, %c0_i32 : i32
    %1 = arith.extui %0 : i1 to i32
    %c0_i32_0 = arith.constant 0 : i32
    %2 = arith.cmpi ne, %1, %c0_i32_0 : i32
    scf.if %2 {
      %c0_i32_9 = arith.constant 0 : i32
      %22 = vector.broadcast %c0_i32_9 : i32 to vector<2x16xi32>
      %c0_10 = arith.constant 0 : index
      %c0_11 = arith.constant 0 : index
      %23 = vector.load %arg4[%c0_10, %c0_11] : memref<2x16xi32, #tpu.memory_space<vmem>>, vector<2x16xi32>
      tpu.vector_store %arg4[%c0_10, %c0_11], %22 {strides = array<i32>} : memref<2x16xi32, #tpu.memory_space<vmem>>, vector<2x16xi32>,
    } else {
    }
    %c1_i32 = arith.constant 1 : i32
    %3 = arith.muli %arg0, %c1_i32 : i32
    %4 = arith.addi %3, %arg1 : i32
    %5 = tpu.iota {dimensions = array<i32: 0>} : vector<2x16xi32>
    %c2_i32 = arith.constant 2 : i32
    %6 = arith.muli %4, %c2_i32 : i32
    %7 = vector.broadcast %6 : i32 to vector<2x16xi32>
    %8 = arith.addi %5, %7 : vector<2x16xi32>
    %c2_i32_1 = arith.constant 2 : i32
    %9 = vector.broadcast %c2_i32_1 : i32 to vector<2x16xi32>
    %10 = arith.cmpi slt, %8, %9 : vector<2x16xi32>
    %c0 = arith.constant 0 : index
    %c0_2 = arith.constant 0 : index
    %11 = vector.load %arg2[%c0, %c0_2] : memref<2x16xi32, #tpu.memory_space<vmem>>, vector<2x16xi32>
    %c102_i32 = arith.constant 102 : i32
    %12 = vector.broadcast %c102_i32 : i32 to vector<2x16xi32>
    %13 = arith.cmpi eq, %11, %12 : vector<2x16xi32>
    %14 = arith.andi %10, %13 : vector<2x16xi1>
    %c0_3 = arith.constant 0 : index
    %c0_4 = arith.constant 0 : index
    %15 = vector.load %arg4[%c0_3, %c0_4] : memref<2x16xi32, #tpu.memory_space<vmem>>, vector<2x16xi32>
    %16 = arith.extui %14 : vector<2x16xi1> to vector<2x16xi32>
    %17 = arith.addi %15, %16 : vector<2x16xi32>
    %c0_5 = arith.constant 0 : index
    %c0_6 = arith.constant 0 : index
    %18 = vector.load %arg4[%c0_5, %c0_6] : memref<2x16xi32, #tpu.memory_space<vmem>>, vector<2x16xi32>
    tpu.vector_store %arg4[%c0_5, %c0_6], %17 {strides = array<i32>} : memref<2x16xi32, #tpu.memory_space<vmem>>, vector<2x16xi32>,
    %c0_i32_7 = arith.constant 0 : i32
    %19 = arith.cmpi eq, %arg1, %c0_i32_7 : i32
    %20 = arith.extui %19 : i1 to i32
    %c0_i32_8 = arith.constant 0 : i32
    %21 = arith.cmpi ne, %20, %c0_i32_8 : i32
    scf.if %21 {
      %c0_i32_9 = arith.constant 0 : i32
      %22 = vector.broadcast %c0_i32_9 : i32 to vector<1x8x128xi32>
      %c0_10 = arith.constant 0 : index
      %c0_11 = arith.constant 0 : index
      %23 = vector.load %arg4[%c0_10, %c0_11] : memref<2x16xi32, #tpu.memory_space<vmem>>, vector<2x16xi32>
      %24 = vector.shape_cast %23 : vector<2x16xi32> to vector<1x2x16xi32>
      %cst = arith.constant dense<0> : vector<1xi32>
      %25 = vector.multi_reduction <add>, %24, %cst [1, 2] : vector<1x2x16xi32> to vector<1xi32>
      %26 = vector.shape_cast %25 : vector<1xi32> to vector<1x1x1xi32>
      %27 = vector.extract %26[0, 0, 0] : i32 from vector<1x1x1xi32>
      %28 = vector.broadcast %27 : i32 to vector<1x8x128xi32>
      %29 = arith.addi %22, %28 : vector<1x8x128xi32>
      %c0_12 = arith.constant 0 : index
      %c0_13 = arith.constant 0 : index
      %c0_14 = arith.constant 0 : index
      %30 = vector.load %arg3[%c0_12, %c0_13, %c0_14] : memref<1x8x128xi32, #tpu.memory_space<vmem>>, vector<1x8x128xi32>
      tpu.vector_store %arg3[%c0_12, %c0_13, %c0_14], %29 {strides = array<i32>} : memref<1x8x128xi32, #tpu.memory_space<vmem>>, vector<1x8x128xi32>,
    } else {
    }
    return
  }
  func.func @transform_0(%arg0: i32, %arg1: i32) -> (i32, i32) {
    %c1_i32 = arith.constant 1 : i32
    %0 = arith.muli %arg0, %c1_i32 : i32
    %1 = arith.addi %0, %arg1 : i32
    %c0_i32 = arith.constant 0 : i32
    %2 = arith.minsi %1, %c0_i32 : i32
    %c0_i32_0 = arith.constant 0 : i32
    %c0_i32_1 = arith.constant 0 : i32
    return %2, %c0_i32_0 : i32, i32
  }
  func.func @transform_1(%arg0: i32, %arg1: i32) -> (i32, i32, i32) {
    %c0_i32 = arith.constant 0 : i32
    %c0_i32_0 = arith.constant 0 : i32
    %c0_i32_1 = arith.constant 0 : i32
    return %arg0, %c0_i32, %c0_i32_0 : i32, i32, i32
  }
}

</mosaic_0001>

<llo_original>
// kernel: tpu_custom_call.1
$region0: #{tpu_custom_call.1}
  #allocation0 [shape = 'u32[]', space=smem, size = 0x4, offset = 0x4, fixed_abs, tag = 'smem constant byte address 0x4 - core index']
  #allocation1 [shape = 'u32[144,128]{1,0:T(1,128)}', space=vmem, size = 0x12000, scoped, tag = 'internal scratch']
  #allocation2 [shape = 's32[2,16]{1,0:T(2,128)}', space=vmem, size = 0x400, scoped, tag = 'scratch operand']
  %s0 = inlined_call_operand.hbm [shape: s32[2,16], index: 0, kind: input, shape index: {}]
  %s1 = inlined_call_operand.hbm [shape: s32[2,8,128], index: 1, kind: output, shape index: {}]
  %s2 = sld [smem:[#allocation0]]
  $region49: #{tpu_custom_call.1} parent=0
    _
  %s4 = ssub.s32 1, %s2
  %s5 = scalar_select 0, %s4, %s2
  $region1: #{tpu_custom_call.1} parent=0
    #allocation3 [shape = 'u8[2048]{0}', space=vmem, size = 0x800, scoped, tag = 'input window, operand 0']
    #allocation4 [shape = 's32[2]{0}', space=sflag, size = 0x8, scoped, tag = 'scoped memory for tpu_custom_call.1']
    #allocation5 [shape = 's32[2]{0}', space=sflag, size = 0x8, scoped, tag = 'scoped memory for tpu_custom_call.1']
    #allocation6 [shape = 'u8[8192]{0}', space=vmem, size = 0x2000, scoped, tag = 'output window, operand 0']
    %6 = vsyncpa [#allocation4], 0
    %s7 = scalar_lea.sflag [#allocation4], 1
    %8 = vsyncpa %s7, 0
    %9 = vsyncpa [#allocation5], 0
    %s10 = scalar_lea.sflag [#allocation5], 1
    %11 = vsyncpa %s10, 0
    loop: start=0, step=1, limit=4
    $region2: #{tpu_custom_call.1} parent=1 // loop_pre_header
      _
    $region3: #{tpu_custom_call.1} parent=1 // loop_header
      %s13 = sphi 0, %s17
      %p14 = scmp.ge.s32.totalorder %s13, 4
      %s20 = sphi 0, %s32
      %s21 = sphi 0, %s28
      %s22 = sphi 0, %s20
      %s23 = sphi 0, %s21
      %s24 = sphi 0, %s22
      %s25 = sphi 0, %s23
      %s41 = sphi 0, %s43
      %s44 = sphi 0, %s41
      %s45 = sphi 0, %s44
      %s61 = sphi 0, %s45
      %s67 = sphi 0, %s69
      %s70 = sphi 0, %s67
      %s71 = sphi 0, %s70
      %s87 = sphi 0, %s71
    $region4: #{tpu_custom_call.1} parent=1 // loop_header_branch
      %16 = sbr.rel (%p14) target = $region8
    $region5: #{tpu_custom_call.1} parent=1 // loop_body
      %s18 = ssub.s32 %s13, 1
      %s19 = ssub.s32 %s13, 2
      %s26 = sadd.s32 1, %s21
      %p27 = scmp.ge.s32.totalorder %s26, 1
      %s28 = scalar_select %p27, 0, %s26
      %s29 = sadd.s32 1, %s20
      %s30 = scalar_select %p27, %s29, %s20
      %p31 = scmp.ge.s32.totalorder %s30, 2
      %s32 = scalar_select %p31, 0, %s30
      %s33 = sadd.s32 %s20, %s21
      %p34 = scmp.lt.s32.totalorder %s33, 0
      %s35 = scalar_select %p34, %s33, 0
      %s36 = sadd.s32 %s32, %s28
      %p37 = scmp.lt.s32.totalorder %s36, 0
      %s38 = scalar_select %p37, %s36, 0
      %s39 = ssub.s32 %s35, %s38
      %p40 = scmp.eq.s32.totalorder %s39, 0
      %s42 = sadd.s32 %s41, 1
      %s43 = scalar_select %p40, %s41, %s42
      %p46 = pneg %p40
      %p47 = scmp.eq.s32.totalorder %s13, 1
      %p48 = por %p46, %p47
      %p49 = scmp.ne.s32.totalorder %s41, %s44
      %p50 = scmp.eq.s32.totalorder %s13, 0
      %p51 = por %p49, %p50
      %p52 = scmp.ne.s32.totalorder %s41, %s44
      %p53 = scmp.eq.s32.totalorder %s18, 1
      %p54 = por %p52, %p53
      %p55 = scmp.ne.s32.totalorder %s44, %s45
      %p56 = scmp.eq.s32.totalorder %s18, 0
      %p57 = por %p55, %p56
      %p58 = scmp.ne.s32.totalorder %s44, %s45
      %p59 = scmp.eq.s32.totalorder %s19, 1
      %p60 = por %p58, %p59
      %p62 = scmp.ne.s32.totalorder %s45, %s61
      %p63 = scmp.eq.s32.totalorder %s19, 0
      %p64 = por %p62, %p63
      %s65 = ssub.s32 %s20, %s32
      %p66 = scmp.eq.s32.totalorder %s65, 0
      %s68 = sadd.s32 %s67, 1
      %s69 = scalar_select %p66, %s67, %s68
      %p72 = pneg %p66
      %p73 = scmp.eq.s32.totalorder %s13, 1
      %p74 = por %p72, %p73
      %p75 = scmp.ne.s32.totalorder %s67, %s70
      %p76 = scmp.eq.s32.totalorder %s13, 0
      %p77 = por %p75, %p76
      %p78 = scmp.ne.s32.totalorder %s67, %s70
      %p79 = scmp.eq.s32.totalorder %s18, 1
      %p80 = por %p78, %p79
      %p81 = scmp.ne.s32.totalorder %s70, %s71
      %p82 = scmp.eq.s32.totalorder %s18, 0
      %p83 = por %p81, %p82
      %p84 = scmp.ne.s32.totalorder %s70, %s71
      %p85 = scmp.eq.s32.totalorder %s19, 1
      %p86 = por %p84, %p85
      %p88 = scmp.ne.s32.totalorder %s71, %s87
      %p89 = scmp.eq.s32.totalorder %s19, 0
      %p90 = por %p88, %p89
      %p91 = scmp.le.s32.totalorder 1, %s13
      %p92 = scmp.lt.s32.totalorder %s13, 3
      %p93 = pnand %p91, %p92
      %p94 = pneg %p93
      // Predicated region
      $region9: #{tpu_custom_call.1} parent=5 // pred_check
        _
      $region10: #{tpu_custom_call.1} parent=5 // pred_check_branch
        %96 = sbr.rel (%p93) target = $region12
      $region11: #{tpu_custom_call.1} parent=5 // pred_region
        %s97 = ssub.s32 %s13, 1
      $region12: #{tpu_custom_call.1} parent=5 // pred_fallthru
        _
      %p98 = scmp.lt.s32.totalorder %s13, 2
      // Predicated region
      $region13: #{tpu_custom_call.1} parent=5 // pred_check
        %p99 = pneg %p98
      $region14: #{tpu_custom_call.1} parent=5 // pred_check_branch
        %101 = sbr.rel (%p99) target = $region16
      $region15: #{tpu_custom_call.1} parent=5 // pred_region
        // Predicated region
        $region17: #{tpu_custom_call.1} parent=15 // pred_check
          %p102 = pneg %p51
        $region18: #{tpu_custom_call.1} parent=15 // pred_check_branch
          %104 = sbr.rel (%p102) target = $region20
        $region19: #{tpu_custom_call.1} parent=15 // pred_region
          %s105 = sand.u32 %s41, 1
          %s106 = scalar_lea.sflag [#allocation4], %s105
          %s107 = sand.u32 %s41, 1
          %s108 = smul.addr %s107, 2
          %s109 = scalar_lea.vmem [#allocation3], %s108
          %s110 = sadd.s32 %s20, %s21
          %p111 = scmp.lt.s32.totalorder %s110, 0
          %s112 = scalar_select %p111, %s110, 0
          %s114 = ssub.s32 32, 32
          %115 = vsyncadd %s106, %s114
          %s116 = smul.addr %s112, 32
          %s117 = scalar_lea.hbm %s0, %s116
          %s119 = sshll.u32 %s109, 4
          %s120 = int_to_ptr.vmem [resolvable:$true] %s119
          %122 = dma.hbm_to_vmem [thread:$0]  %s117, 32, %s120, %s106
        $region20: #{tpu_custom_call.1} parent=15 // pred_fallthru
          _
      $region16: #{tpu_custom_call.1} parent=5 // pred_fallthru
        _
      %p123 = scmp.le.s32.totalorder 1, %s13
      %p124 = scmp.lt.s32.totalorder %s13, 3
      %p125 = pnand %p123, %p124
      %p126 = pneg %p125
      // Predicated region
      $region21: #{tpu_custom_call.1} parent=5 // pred_check
        _
      $region22: #{tpu_custom_call.1} parent=5 // pred_check_branch
        %128 = sbr.rel (%p125) target = $region24
      $region23: #{tpu_custom_call.1} parent=5 // pred_region
        %s129 = ssub.s32 %s13, 1
        %s130 = sand.u32 %s44, 1
        %s131 = scalar_lea.sflag [#allocation4], %s130
        %s132 = sand.u32 %s44, 1
        %s133 = smul.addr %s132, 2
        %s134 = scalar_lea.vmem [#allocation3], %s133
        // Predicated region
        $region25: #{tpu_custom_call.1} parent=23 // pred_check
          %p135 = pneg %p57
        $region26: #{tpu_custom_call.1} parent=23 // pred_check_branch
          %137 = sbr.rel (%p135) target = $region28
        $region27: #{tpu_custom_call.1} parent=23 // pred_region
          %138 = dma.done %s131, 32
        $region28: #{tpu_custom_call.1} parent=23 // pred_fallthru
          _
        %s139 = sand.u32 %s44, 1
        %s140 = scalar_lea.sflag [#allocation4], %s139
        %s141 = sand.u32 %s44, 1
        %s142 = smul.addr %s141, 2
        %s143 = scalar_lea.vmem [#allocation3], %s142
        %p144 = pneg %p57
        %p145 = pneg %p54
        %p146 = pneg %p83
        %p147 = pneg %p80
        %s148 = sand.u32 %s70, 1
        %s149 = scalar_lea.sflag [#allocation5], %s148
        %s150 = sand.u32 %s70, 1
        %s151 = smul.addr %s150, 8
        %s152 = scalar_lea.vmem [#allocation6], %s151
        %s153 = sadd.s32 %s22, %s23
        %p154 = scmp.lt.s32.totalorder %s153, 0
        %s155 = scalar_select %p154, %s153, 0
        %p156 = scmp.eq.s32.totalorder %s23, 0
        // Predicated region
        $region29: #{tpu_custom_call.1} parent=23 // pred_check
          %p157 = pneg %p156
        $region30: #{tpu_custom_call.1} parent=23 // pred_check_branch
          %159 = sbr.rel (%p157) target = $region32
        $region31: #{tpu_custom_call.1} parent=23 // pred_region
          %vm160 = vcmask 123904
          %161 = vst.msk [vmem:[#allocation2] sm:$0x3] %vm160, 0
        $region32: #{tpu_custom_call.1} parent=23 // pred_fallthru
          _
        %s162 = sadd.s32 %s22, %s23
        %v163 = vlaneseq
        %v164 = vshrl.u32 %v163, 7
        %s165 = smul.u32 %s162, 2
        %v166 = vstv %s165
        %v167 = vadd.s32 %v164, %v166
        %vm168 = vcmp.lt.s32.totalorder %v167, 2
        %v169 = vld [vmem:[%s134] sm:$0x3]
        %vm170 = vcmp.eq.s32.totalorder %v169, 102
        %vm171 = vmand %vm168, %vm170
        %v172 = vld [vmem:[#allocation2] sm:$0x3]
        %v173 = vsel %vm171, 1, 0
        %v174 = vadd.s32 %v172, %v173
        %vm175 = vcmask 123904
        %176 = vst.msk [vmem:[#allocation2] sm:$0x3] %vm175, %v174
        // Predicated region
        $region33: #{tpu_custom_call.1} parent=23 // pred_check
          %p177 = pneg %p156
        $region34: #{tpu_custom_call.1} parent=23 // pred_check_branch
          %179 = sbr.rel (%p177) target = $region36
        $region35: #{tpu_custom_call.1} parent=23 // pred_region
          %v180 = vld [vmem:[#allocation2] sm:$0x3]
          %v181 = vsel %vm175, %v180, 0
          %v182 = vand.u32 %v181, 65535
          %v183 = vshrl.u32 %v181, 16
          %v184 = vcvt.s32.f32 %v182
          %v185 = vcvt.s32.f32 %v183
          %186 = vadd.xlane.f32.xlu0 %v184
          %v187 = vpop.xlane.xlu0 %186
          %188 = vadd.xlane.f32.xlu0 %v185
          %v189 = vpop.xlane.xlu0 %188
          %v190 = vcvt.f32.s32 %v187
          %v191 = vcvt.f32.s32 %v189
          %v192 = vshll.u32 %v191, 16
          %v193 = vadd.s32 %v192, %v190
          %v194 = vrot.slane %v193, 4
          %v195 = vadd.s32 %v193, %v194
          %v196 = vrot.slane %v195, 2
          %v197 = vadd.s32 %v195, %v196
          %v198 = vrot.slane %v197, 1
          %v199 = vadd.s32 %v197, %v198
          %s200 = vtos %v199
          %v201 = vstv %s200
          %202 = vst [vmem:[%s152] sm:$0xff] %v201
        $region36: #{tpu_custom_call.1} parent=23 // pred_fallthru
          _
        %s203 = sand.u32 %s70, 1
        %s204 = scalar_lea.sflag [#allocation5], %s203
        %s205 = sand.u32 %s70, 1
        %s206 = smul.addr %s205, 8
        %s207 = scalar_lea.vmem [#allocation6], %s206
        // Predicated region
        $region37: #{tpu_custom_call.1} parent=23 // pred_check
          %p208 = pneg %p80
        $region38: #{tpu_custom_call.1} parent=23 // pred_check_branch
          %210 = sbr.rel (%p208) target = $region40
        $region39: #{tpu_custom_call.1} parent=23 // pred_region
          %s212 = ssub.s32 128, 128
          %213 = vsyncadd %s204, %s212
          %s214 = smul.addr %s22, 128
          %s215 = scalar_lea.hbm %s1, %s214
          %s217 = sshll.u32 %s207, 4
          %s218 = int_to_ptr.vmem [resolvable:$true] %s217
          %220 = dma.vmem_to_hbm [thread:$0]  %s218, 128, %s215, %s204
        $region40: #{tpu_custom_call.1} parent=23 // pred_fallthru
          _
      $region24: #{tpu_custom_call.1} parent=5 // pred_fallthru
        _
      %p221 = scmp.le.s32.totalorder 2, %s13
      // Predicated region
      $region41: #{tpu_custom_call.1} parent=5 // pred_check
        %p222 = pneg %p221
      $region42: #{tpu_custom_call.1} parent=5 // pred_check_branch
        %224 = sbr.rel (%p222) target = $region44
      $region43: #{tpu_custom_call.1} parent=5 // pred_region
        %s225 = ssub.s32 %s13, 2
        // Predicated region
        $region45: #{tpu_custom_call.1} parent=43 // pred_check
          %p226 = pneg %p86
        $region46: #{tpu_custom_call.1} parent=43 // pred_check_branch
          %228 = sbr.rel (%p226) target = $region48
        $region47: #{tpu_custom_call.1} parent=43 // pred_region
          %s229 = sand.u32 %s71, 1
          %s230 = scalar_lea.sflag [#allocation5], %s229
          %s231 = sand.u32 %s71, 1
          %s232 = smul.addr %s231, 8
          %s233 = scalar_lea.vmem [#allocation6], %s232
          %234 = dma.done %s230, 128
        $region48: #{tpu_custom_call.1} parent=43 // pred_fallthru
          _
      $region44: #{tpu_custom_call.1} parent=5 // pred_fallthru
        _
    $region6: #{tpu_custom_call.1} parent=1 // loop_footer
      %s17 = sadd.s32 1, %s13
    $region7: #{tpu_custom_call.1} parent=1 // loop_footer_branch
      %12 = sbr.rel target = $region3
    $region8: #{tpu_custom_call.1} parent=1 // loop_exit
      _
    %235 = vsyncpa [#allocation4], 1
    %s236 = scalar_lea.sflag [#allocation4], 1
    %237 = vsyncpa %s236, 1
    %238 = vsyncpa [#allocation5], 1
    %s239 = scalar_lea.sflag [#allocation5], 1
    %240 = vsyncpa %s239, 1

</llo_original>
